<compile_context>
chip_gen: v5e
topology: v5e:2x2
jax: 0.10.0
libtpu: 0.0.40
codegen_flags: <defaults>
</compile_context>

<pallas_src>
import jax
import jax.numpy as jnp
from jax import lax
from jax.experimental import pallas as pl
from jax.experimental.pallas import tpu as pltpu


_VMEM_LIMIT_BYTES = 48 * 1024 * 1024      # explicit scoped-VMEM cap (all gens)
_VMEM_COMPUTE_BUDGET = 24 * 1024 * 1024   # target in-flight estimate (<= cap/2)
_MAX_TILE_N = 8192                        # diminishing returns past this


def _derive_tile_n(n, c, itemsize):
    """Pick the largest batch tile that fits the VMEM budget."""
    sub = max(8, 32 // itemsize)          # sublane packing: f32->8, bf16->16, i8->32
    c_pad = ((c + 127) // 128) * 128      # lane padding of a row in VMEM
    # Per-row estimate: 2x double-buffered native logits block
    # + ~5 full-width f32/int32 temporaries (f32 copy, shifted, exp, iota, select)
    # + 4x lane-padded (tile_n, 1) columns (targets in + per-example out, 2 bufs).
    bytes_per_row = c_pad * (2 * itemsize + 5 * 4) + 4 * 512
    tile = _VMEM_COMPUTE_BUDGET // bytes_per_row
    tile = min(int(tile), _MAX_TILE_N, n)
    if tile >= n:
        return n                          # single full block (any N allowed)
    return max(sub, (tile // sub) * sub)


# ----------------------------------------------------------------------------
# Kernel 1: per-example cross-entropy
#   per_ex_i = logsumexp(logits_i) - logits_i[target_i]
# One (tile_n, C) block per grid step; no accumulator, no masking -> the grid
# axis is fully parallel (both v7x TensorCores).  Mean-reduction done in JAX.
# ----------------------------------------------------------------------------
def _ce_kernel(logits_ref, targets_ref, out_ref):
    # Native-dtype (bf16/f32) block read; compute in f32 (v5e has no bf16
    # VPU/EUP path, and we want a stable logsumexp anyway).
    logits = logits_ref[...].astype(jnp.float32)            # (tile_n, C)
    tgt = targets_ref[...]                                   # (tile_n, 1) int32
    tn, c = logits.shape

    m = jnp.max(logits, axis=-1, keepdims=True)
    shifted = logits - m                                      # reused for gather
    col_ids = lax.broadcasted_iota(jnp.int32, (tn, c), 1)
    tgt_shift = jnp.sum(jnp.where(col_ids == tgt, shifted, 0.0),
                        axis=-1, keepdims=True)
    lse_shift = jnp.log(jnp.sum(jnp.exp(shifted), axis=-1, keepdims=True))
    # Rows past N in the final block hold garbage, but rows are independent and
    # the edge-block store below is clipped to the (N, 1) output, so they are
    # never observed.
    out_ref[...] = lse_shift - tgt_shift


def cross_entropy_loss(logits, targets, tile_n=None):
    """Mean cross-entropy (== nn.CrossEntropyLoss default reduction).

    `logits` may be bf16 or f32; the f32 cast happens inside the kernel.
    """
    n, c = logits.shape
    itemsize = jnp.dtype(logits.dtype).itemsize
    sub = max(8, 32 // itemsize)

    if tile_n is None:
        tile_n = _derive_tile_n(n, c, itemsize)
    elif tile_n >= n:
        tile_n = n
    else:
        tile_n = max(sub, (tile_n // sub) * sub)

    targets2d = targets.astype(jnp.int32).reshape(n, 1)
    grid = (pl.cdiv(n, tile_n),)

    per_ex = pl.pallas_call(
        _ce_kernel,
        out_shape=jax.ShapeDtypeStruct((n, 1), jnp.float32),
        grid=grid,
        in_specs=[
            pl.BlockSpec((tile_n, c), lambda i: (i, 0)),
            pl.BlockSpec((tile_n, 1), lambda i: (i, 0)),
        ],
        out_specs=pl.BlockSpec((tile_n, 1), lambda i: (i, 0)),
        compiler_params=pltpu.CompilerParams(
            dimension_semantics=("parallel",),
            vmem_limit_bytes=_VMEM_LIMIT_BYTES),
    )(logits, targets2d)

    # Tiny (N,) reduction + 1/N in JAX (pairwise, and keeps the grid parallel).
    return jnp.mean(per_ex)


# ----------------------------------------------------------------------------
# Kernel 2: L1 sum over one parameter (sum(|param|)).
# Dead code in the PyTorch forward (computed, never added), so the wrapper
# below skips it by default.  Per-row partial sums -> parallel grid.
# ----------------------------------------------------------------------------
def _l1_kernel(p_ref, out_ref):
    out_ref[...] = jnp.sum(jnp.abs(p_ref[...].astype(jnp.float32)),
                           axis=-1, keepdims=True)


def _l1_one_param(p, tile_r=2048):
    lane = 128
    flat = p.reshape(-1)
    if flat.shape[0] == 0:
        return jnp.float32(0.0)
    # TODO(synk): the (<=127-element) pad still costs an XLA copy of the whole
    # param; could be avoided with an in-kernel lane mask on the final block.
    pad = (-flat.shape[0]) % lane
    if pad:
        flat = jnp.pad(flat, (0, pad))            # |0| contributes nothing
    slab = flat.reshape(-1, lane)
    rows = slab.shape[0]
    tile_r = min(tile_r, rows)
    if tile_r < rows:
        tile_r = max(8, (tile_r // 8) * 8)
    grid = (pl.cdiv(rows, tile_r),)

    row_sums = pl.pallas_call(
        _l1_kernel,
        out_shape=jax.ShapeDtypeStruct((rows, 1), jnp.float32),
        grid=grid,
        in_specs=[pl.BlockSpec((tile_r, lane), lambda i: (i, 0))],
        out_specs=pl.BlockSpec((tile_r, 1), lambda i: (i, 0)),
        compiler_params=pltpu.CompilerParams(
            dimension_semantics=("parallel",),
            vmem_limit_bytes=_VMEM_LIMIT_BYTES),
    )(slab)
    return jnp.sum(row_sums)


def l1_regularization(params):
    total = jnp.float32(0.0)
    for p in params:
        total = total + _l1_one_param(p)
    return total


# ----------------------------------------------------------------------------
# Module equivalent of Classification_Loss.forward
# ----------------------------------------------------------------------------
def classification_loss(model_output, targets, model_params=None,
                        compute_dead_regularization=False, tile_n=None):
    # The L1 term is dead code in the PyTorch module (computed, never added),
    # so by default we skip it entirely — the returned loss is identical and
    # we avoid a full extra HBM pass over every parameter.
    if compute_dead_regularization and model_params is not None:
        _ = l1_regularization(model_params)  # noqa: F841 (dead, mirrors PyTorch)
    return cross_entropy_loss(model_output, targets, tile_n=tile_n)


if __name__ == "__main__":
    key = jax.random.PRNGKey(0)
    k_logits, k_tgt, k_w1, k_w2 = jax.random.split(key, 4)

    N, C = 10, 32  # N not a multiple of the tile -> exercises the clipped edge block
    model_output = jax.random.normal(k_logits, (N, C), dtype=jnp.float32)
    targets = jax.random.randint(k_tgt, (N,), 0, C, dtype=jnp.int32)

    # Synthetic "model" parameters: a small conv + linear head.
    conv_w = jax.random.normal(k_w1, (4, 4, 3, 3), dtype=jnp.float32) * 0.1
    conv_b = jnp.zeros((4,), dtype=jnp.float32)
    fc_w = jax.random.normal(k_w2, (C, 64), dtype=jnp.float32) * 0.1
    fc_b = jnp.zeros((C,), dtype=jnp.float32)
    model_params = [conv_w, conv_b, fc_w, fc_b]

    def ce_ref(lg, tg):
        lg = lg.astype(jnp.float32)
        return jnp.mean(
            jax.nn.logsumexp(lg, axis=-1)
            - jnp.take_along_axis(lg, tg[:, None], axis=-1)[:, 0])

    # 1) f32, forced small tile -> grid=2 with a clipped partial final block.
    loss = classification_loss(model_output, targets, model_params, tile_n=8)
    loss = jax.block_until_ready(loss)
    assert jnp.allclose(loss, ce_ref(model_output, targets),
                        atol=1e-5, rtol=1e-5), (loss, ce_ref(model_output, targets))

    # 2) Auto-derived tile (single full block at this tiny shape).
    loss_auto = jax.block_until_ready(cross_entropy_loss(model_output, targets))
    assert jnp.allclose(loss_auto, ce_ref(model_output, targets),
                        atol=1e-5, rtol=1e-5), (loss_auto,)

    # 3) bf16 logits, multi-block parallel grid; tile_n=16 matches bf16 packing.
    N2 = 64
    logits_bf16 = jax.random.normal(jax.random.PRNGKey(1), (N2, C),
                                    dtype=jnp.float32).astype(jnp.bfloat16)
    tgt2 = jax.random.randint(jax.random.PRNGKey(2), (N2,), 0, C, dtype=jnp.int32)
    loss_bf16 = jax.block_until_ready(cross_entropy_loss(logits_bf16, tgt2, tile_n=16))
    ref_bf16 = ce_ref(logits_bf16, tgt2)
    assert jnp.allclose(loss_bf16, ref_bf16, atol=1e-4, rtol=1e-4), (loss_bf16, ref_bf16)

    # 4) The (dead) tiled L1 kernel, verified for fidelity but not part of the
    #    default forward path.
    reg = jax.block_until_ready(l1_regularization(model_params))
    ref_reg = sum(jnp.sum(jnp.abs(p)) for p in model_params)
    assert jnp.allclose(reg, ref_reg, atol=1e-4, rtol=1e-5), (reg, ref_reg)

    print("KERNEL_OK")
</pallas_src>

<mosaic_0001>
module attributes {stable_mosaic.version = 11 : i64} {
  func.func @_ce_kernel(%arg0: i32, %arg1: memref<8x32xf32, #tpu.memory_space<vmem>>, %arg2: memref<8x1xi32, #tpu.memory_space<vmem>>, %arg3: memref<8x1xf32, #tpu.memory_space<vmem>>) attributes {dimension_semantics = [#tpu.dimension_semantics<parallel>], iteration_bounds = array<i64: 2>, scalar_prefetch = 0 : i64, scratch_operands = 0 : i64, tpu.core_type = #tpu.core_type<tc>, window_params = [{transform_indices = @transform_0, window_bounds = array<i64: 8, 32>}, {transform_indices = @transform_1, window_bounds = array<i64: 8, 1>}, {transform_indices = @transform_2, window_bounds = array<i64: 8, 1>}]} {
    %c0 = arith.constant 0 : index
    %c0_0 = arith.constant 0 : index
    %0 = vector.load %arg1[%c0, %c0_0] : memref<8x32xf32, #tpu.memory_space<vmem>>, vector<8x32xf32>
    %c0_1 = arith.constant 0 : index
    %c0_2 = arith.constant 0 : index
    %1 = vector.load %arg2[%c0_1, %c0_2] : memref<8x1xi32, #tpu.memory_space<vmem>>, vector<8x1xi32>
    %cst = arith.constant dense<0xFF800000> : vector<8xf32>
    %2 = vector.multi_reduction <maximumf>, %0, %cst [1] : vector<8x32xf32> to vector<8xf32>
    %3 = vector.shape_cast %2 : vector<8xf32> to vector<8x1xf32>
    %4 = vector.broadcast %3 : vector<8x1xf32> to vector<8x32xf32>
    %5 = arith.subf %0, %4 : vector<8x32xf32>
    %6 = tpu.iota {dimensions = array<i32: 1>} : vector<8x32xi32>
    %7 = vector.broadcast %1 : vector<8x1xi32> to vector<8x32xi32>
    %8 = arith.cmpi eq, %6, %7 : vector<8x32xi32>
    %cst_3 = arith.constant 0.000000e+00 : f32
    %9 = vector.broadcast %cst_3 : f32 to vector<8x32xf32>
    %10 = arith.select %8, %5, %9 : vector<8x32xi1>, vector<8x32xf32>
    %cst_4 = arith.constant dense<0.000000e+00> : vector<8xf32>
    %11 = vector.multi_reduction <add>, %10, %cst_4 [1] : vector<8x32xf32> to vector<8xf32>
    %12 = vector.shape_cast %11 : vector<8xf32> to vector<8x1xf32>
    %13 = math.exp %5 : vector<8x32xf32>
    %cst_5 = arith.constant dense<0.000000e+00> : vector<8xf32>
    %14 = vector.multi_reduction <add>, %13, %cst_5 [1] : vector<8x32xf32> to vector<8xf32>
    %15 = vector.shape_cast %14 : vector<8xf32> to vector<8x1xf32>
    %16 = math.log %15 : vector<8x1xf32>
    %17 = arith.subf %16, %12 : vector<8x1xf32>
    %c0_6 = arith.constant 0 : index
    %c0_7 = arith.constant 0 : index
    %18 = vector.load %arg3[%c0_6, %c0_7] : memref<8x1xf32, #tpu.memory_space<vmem>>, vector<8x1xf32>
    tpu.vector_store %arg3[%c0_6, %c0_7], %17 {strides = array<i32>} : memref<8x1xf32, #tpu.memory_space<vmem>>, vector<8x1xf32>,
    return
  }
  func.func @transform_0(%arg0: i32) -> (i32, i32) {
    %c0_i32 = arith.constant 0 : i32
    %c0_i32_0 = arith.constant 0 : i32
    return %arg0, %c0_i32 : i32, i32
  }
  func.func @transform_1(%arg0: i32) -> (i32, i32) {
    %c0_i32 = arith.constant 0 : i32
    %c0_i32_0 = arith.constant 0 : i32
    return %arg0, %c0_i32 : i32, i32
  }
  func.func @transform_2(%arg0: i32) -> (i32, i32) {
    %c0_i32 = arith.constant 0 : i32
    %c0_i32_0 = arith.constant 0 : i32
    return %arg0, %c0_i32 : i32, i32
  }
}

</mosaic_0001>

<llo_original>
// kernel: tpu_custom_call.1
$region0: #{tpu_custom_call.1}
  #allocation0 [shape = 'u32[]', space=smem, size = 0x4, offset = 0x4, fixed_abs, tag = 'smem constant byte address 0x4 - core index']
  #allocation1 [shape = 'u32[72,128]{1,0:T(1,128)}', space=vmem, size = 0x9000, scoped, tag = 'internal scratch']
  %s0 = inlined_call_operand.vmem [shape: f32[10,32], index: 0, kind: input, shape index: {}]
  %s1 = inlined_call_operand.vmem [shape: s32[10,1], index: 1, kind: input, shape index: {}]
  %s2 = inlined_call_operand.vmem [shape: f32[10,1], index: 2, kind: output, shape index: {}]
  %s3 = sld [smem:[#allocation0]]
  $region41: #{tpu_custom_call.1} parent=0
    _
  %s5 = ssub.s32 1, %s3
  %s6 = scalar_select 0, %s5, %s3
  loop: start=0, step=1, limit=4
  $region2: #{tpu_custom_call.1} parent=0 // loop_pre_header
    _
  $region3: #{tpu_custom_call.1} parent=0 // loop_header
    %s8 = sphi 0, %s12
    %p9 = scmp.ge.s32.totalorder %s8, 4
    %s18 = sphi 0, %s20
    %s21 = sphi 0, %s18
    %s22 = sphi 0, %s21
    %s38 = sphi 0, %s22
    %s44 = sphi 0, %s46
    %s47 = sphi 0, %s44
    %s48 = sphi 0, %s47
    %s64 = sphi 0, %s48
    %s70 = sphi 0, %s72
    %s73 = sphi 0, %s70
    %s74 = sphi 0, %s73
    %s90 = sphi 0, %s74
  $region4: #{tpu_custom_call.1} parent=0 // loop_header_branch
    %11 = sbr.rel (%p9) target = $region8
  $region5: #{tpu_custom_call.1} parent=0 // loop_body
    %s13 = ssub.s32 %s8, 1
    %s14 = ssub.s32 %s8, 2
    %s15 = sadd.s32 %s8, 1
    %s16 = ssub.s32 %s8, %s15
    %p17 = scmp.eq.s32.totalorder %s16, 0
    %s19 = sadd.s32 %s18, 1
    %s20 = scalar_select %p17, %s18, %s19
    %p23 = pneg %p17
    %p24 = scmp.eq.s32.totalorder %s8, 1
    %p25 = por %p23, %p24
    %p26 = scmp.ne.s32.totalorder %s18, %s21
    %p27 = scmp.eq.s32.totalorder %s8, 0
    %p28 = por %p26, %p27
    %p29 = scmp.ne.s32.totalorder %s18, %s21
    %p30 = scmp.eq.s32.totalorder %s13, 1
    %p31 = por %p29, %p30
    %p32 = scmp.ne.s32.totalorder %s21, %s22
    %p33 = scmp.eq.s32.totalorder %s13, 0
    %p34 = por %p32, %p33
    %p35 = scmp.ne.s32.totalorder %s21, %s22
    %p36 = scmp.eq.s32.totalorder %s14, 1
    %p37 = por %p35, %p36
    %p39 = scmp.ne.s32.totalorder %s22, %s38
    %p40 = scmp.eq.s32.totalorder %s14, 0
    %p41 = por %p39, %p40
    %s42 = ssub.s32 %s8, %s15
    %p43 = scmp.eq.s32.totalorder %s42, 0
    %s45 = sadd.s32 %s44, 1
    %s46 = scalar_select %p43, %s44, %s45
    %p49 = pneg %p43
    %p50 = scmp.eq.s32.totalorder %s8, 1
    %p51 = por %p49, %p50
    %p52 = scmp.ne.s32.totalorder %s44, %s47
    %p53 = scmp.eq.s32.totalorder %s8, 0
    %p54 = por %p52, %p53
    %p55 = scmp.ne.s32.totalorder %s44, %s47
    %p56 = scmp.eq.s32.totalorder %s13, 1
    %p57 = por %p55, %p56
    %p58 = scmp.ne.s32.totalorder %s47, %s48
    %p59 = scmp.eq.s32.totalorder %s13, 0
    %p60 = por %p58, %p59
    %p61 = scmp.ne.s32.totalorder %s47, %s48
    %p62 = scmp.eq.s32.totalorder %s14, 1
    %p63 = por %p61, %p62
    %p65 = scmp.ne.s32.totalorder %s48, %s64
    %p66 = scmp.eq.s32.totalorder %s14, 0
    %p67 = por %p65, %p66
    %s68 = ssub.s32 %s8, %s15
    %p69 = scmp.eq.s32.totalorder %s68, 0
    %s71 = sadd.s32 %s70, 1
    %s72 = scalar_select %p69, %s70, %s71
    %p75 = pneg %p69
    %p76 = scmp.eq.s32.totalorder %s8, 1
    %p77 = por %p75, %p76
    %p78 = scmp.ne.s32.totalorder %s70, %s73
    %p79 = scmp.eq.s32.totalorder %s8, 0
    %p80 = por %p78, %p79
    %p81 = scmp.ne.s32.totalorder %s70, %s73
    %p82 = scmp.eq.s32.totalorder %s13, 1
    %p83 = por %p81, %p82
    %p84 = scmp.ne.s32.totalorder %s73, %s74
    %p85 = scmp.eq.s32.totalorder %s13, 0
    %p86 = por %p84, %p85
    %p87 = scmp.ne.s32.totalorder %s73, %s74
    %p88 = scmp.eq.s32.totalorder %s14, 1
    %p89 = por %p87, %p88
    %p91 = scmp.ne.s32.totalorder %s74, %s90
    %p92 = scmp.eq.s32.totalorder %s14, 0
    %p93 = por %p91, %p92
    %p94 = scmp.le.s32.totalorder 1, %s8
    %p95 = scmp.lt.s32.totalorder %s8, 3
    %p96 = pnand %p94, %p95
    %p97 = pneg %p96
    // Predicated region
    $region9: #{tpu_custom_call.1} parent=5 // pred_check
      _
    $region10: #{tpu_custom_call.1} parent=5 // pred_check_branch
      %99 = sbr.rel (%p96) target = $region12
    $region11: #{tpu_custom_call.1} parent=5 // pred_region
      %s100 = ssub.s32 %s8, 1
    $region12: #{tpu_custom_call.1} parent=5 // pred_fallthru
      _
    %p101 = scmp.lt.s32.totalorder %s8, 2
    // Predicated region
    $region13: #{tpu_custom_call.1} parent=5 // pred_check
      %p102 = pneg %p101
    $region14: #{tpu_custom_call.1} parent=5 // pred_check_branch
      %104 = sbr.rel (%p102) target = $region16
    $region15: #{tpu_custom_call.1} parent=5 // pred_region
      // Predicated region
      $region17: #{tpu_custom_call.1} parent=15 // pred_check
        %p105 = pneg %p28
      $region18: #{tpu_custom_call.1} parent=15 // pred_check_branch
        %107 = sbr.rel (%p105) target = $region20
      $region19: #{tpu_custom_call.1} parent=15 // pred_region
        %p108 = scmp.lt.s32.totalorder %s8, 1
        %s109 = scalar_select %p108, %s8, 1
        %s110 = smul.addr %s109, 8
        %s111 = scalar_lea.vmem %s0, %s110
      $region20: #{tpu_custom_call.1} parent=15 // pred_fallthru
        _
      // Predicated region
      $region21: #{tpu_custom_call.1} parent=15 // pred_check
        %p112 = pneg %p54
      $region22: #{tpu_custom_call.1} parent=15 // pred_check_branch
        %114 = sbr.rel (%p112) target = $region24
      $region23: #{tpu_custom_call.1} parent=15 // pred_region
        %p115 = scmp.lt.s32.totalorder %s8, 1
        %s116 = scalar_select %p115, %s8, 1
        %s117 = smul.addr %s116, 8
        %s118 = scalar_lea.vmem %s1, %s117
      $region24: #{tpu_custom_call.1} parent=15 // pred_fallthru
        _
    $region16: #{tpu_custom_call.1} parent=5 // pred_fallthru
      _
    %p119 = scmp.le.s32.totalorder 1, %s8
    %p120 = scmp.lt.s32.totalorder %s8, 3
    %p121 = pnand %p119, %p120
    %p122 = pneg %p121
    // Predicated region
    $region25: #{tpu_custom_call.1} parent=5 // pred_check
      _
    $region26: #{tpu_custom_call.1} parent=5 // pred_check_branch
      %124 = sbr.rel (%p121) target = $region28
    $region27: #{tpu_custom_call.1} parent=5 // pred_region
      %s125 = ssub.s32 %s8, 1
      %p126 = scmp.lt.s32.totalorder %s13, 1
      %s127 = scalar_select %p126, %s13, 1
      %s128 = smul.addr %s127, 8
      %s129 = scalar_lea.vmem %s0, %s128
      %p130 = pneg %p34
      %p131 = pneg %p31
      %p132 = scmp.lt.s32.totalorder %s13, 1
      %s133 = scalar_select %p132, %s13, 1
      %s134 = smul.addr %s133, 8
      %s135 = scalar_lea.vmem %s1, %s134
      %p136 = pneg %p60
      %p137 = pneg %p57
      %p138 = pneg %p86
      %p139 = pneg %p83
      %p140 = scmp.lt.s32.totalorder %s13, 1
      %s141 = scalar_select %p140, %s13, 1
      %s142 = smul.addr %s141, 8
      %s143 = scalar_lea.vmem %s2, %s142
      %p144 = scmp.lt.s32.totalorder %s13, 1
      %s145 = scalar_select %p144, %s13, 1
      %s146 = smul.addr %s145, 8
      %s147 = scalar_lea.vmem %s0, %s146
      %p148 = scmp.lt.s32.totalorder %s13, 1
      %s149 = scalar_select %p148, %s13, 1
      %s150 = smul.addr %s149, 8
      %s151 = scalar_lea.vmem %s1, %s150
      %p152 = scmp.lt.s32.totalorder %s13, 1
      %s153 = scalar_select %p152, %s13, 1
      %s154 = smul.addr %s153, 8
      %s155 = scalar_lea.vmem %s2, %s154
      %v156 = vld [vmem:[%s147] sm:$0xff]
      %v157 = vld [vmem:[%s151] sm:$0xff]
      %vm158 = vcmask 261120
      %v159 = vsel %vm158, %v156, -inf
      %160 = vmax.xlane.f32.xlu0 %v159
      %v161 = vpop.xlane.xlu0 %160
      %v162 = vsub.f32 %v156, %v161
      %v163 = vlaneseq
      %v164 = vand.u32 %v163, 127
      %165 = vset.pattern.permute.xlu0 0
      %166 = vperm.xlu0 %165, %v157
      %v167 = vpop.permute.xlu0 %166
      %vm168 = vcmp.eq.s32.totalorder %v164, %v167
      %v169 = vsel %vm168, %v162, 0.0
      %v170 = vsel %vm158, %v169, 0.0
      %171 = vadd.xlane.f32.xlu0 %v170
      %v172 = vpop.xlane.xlu0 %171
      %v173 = vmul.f32 %v162, 1.442695
      %v174 = vpow.pop %v173
      %v175 = vsel %vm158, %v174, 0.0
      %176 = vadd.xlane.f32.xlu0 %v175
      %v177 = vpop.xlane.xlu0 %176
      %v178 = vlog2.pop %v177
      %v179 = vmul.f32 %v178, 0.6931472
      %v180 = vsub.f32 %v179, %v172
      %vm181 = vcmask 7168
      %182 = vst.msk [vmem:[%s155] sm:$0xff] %vm181, %v180
      %p183 = scmp.lt.s32.totalorder %s13, 1
      %s184 = scalar_select %p183, %s13, 1
      %s185 = smul.addr %s184, 8
      %s186 = scalar_lea.vmem %s2, %s185
      // Predicated region
      $region29: #{tpu_custom_call.1} parent=27 // pred_check
        %p187 = pneg %p83
      $region30: #{tpu_custom_call.1} parent=27 // pred_check_branch
        %189 = sbr.rel (%p187) target = $region32
      $region31: #{tpu_custom_call.1} parent=27 // pred_region
        _
      $region32: #{tpu_custom_call.1} parent=27 // pred_fallthru
        _
    $region28: #{tpu_custom_call.1} parent=5 // pred_fallthru
      _
    %p190 = scmp.le.s32.totalorder 2, %s8
    // Predicated region
    $region33: #{tpu_custom_call.1} parent=5 // pred_check
      %p191 = pneg %p190
    $region34: #{tpu_custom_call.1} parent=5 // pred_check_branch
      %193 = sbr.rel (%p191) target = $region36
    $region35: #{tpu_custom_call.1} parent=5 // pred_region
      %s194 = ssub.s32 %s8, 2
      // Predicated region
      $region37: #{tpu_custom_call.1} parent=35 // pred_check
        %p195 = pneg %p89
      $region38: #{tpu_custom_call.1} parent=35 // pred_check_branch
        %197 = sbr.rel (%p195) target = $region40
      $region39: #{tpu_custom_call.1} parent=35 // pred_region
        %p198 = scmp.lt.s32.totalorder %s14, 1
        %s199 = scalar_select %p198, %s14, 1
        %s200 = smul.addr %s199, 8
        %s201 = scalar_lea.vmem %s2, %s200
      $region40: #{tpu_custom_call.1} parent=35 // pred_fallthru
        _
    $region36: #{tpu_custom_call.1} parent=5 // pred_fallthru
      _
  $region6: #{tpu_custom_call.1} parent=0 // loop_footer
    %s12 = sadd.s32 1, %s8
  $region7: #{tpu_custom_call.1} parent=0 // loop_footer_branch
    %7 = sbr.rel target = $region3
  $region8: #{tpu_custom_call.1} parent=0 // loop_exit
    _

</llo_original>
